<compile_context>
chip_gen: v5e
topology: v5e:2x2
jax: 0.10.0
libtpu: 0.0.40
codegen_flags: <defaults>
</compile_context>

<pallas_src>
import functools
import math

import jax
import jax.numpy as jnp
from jax import lax
from jax.experimental import pallas as pl
from jax.experimental.pallas import tpu as pltpu


def policy_kernel(x_ref, w1_ref, b1_ref, w23_ref, b23_ref, out_ref, *, out_size):
    x = x_ref[...]                                                    # (tb, in)

    # fc1 + ReLU  (MXU matmul, f32 accumulation)
    h = jnp.dot(x, w1_ref[...], preferred_element_type=jnp.float32) + b1_ref[...]
    h = jnp.maximum(h, 0.0)                                           # (tb, hidden)

    # Fused heads: one matmul produces [logits | value | zero-pad] lanes.
    y = jnp.dot(h, w23_ref[...], preferred_element_type=jnp.float32) + b23_ref[...]  # (tb, Np)

    col = lax.broadcasted_iota(jnp.int32, y.shape, 1)
    is_logit = col < out_size                      # first out_size lanes: action logits
    is_value = col == out_size                     # next lane: critic value

    # Stable softmax over the logit lanes only (padded lanes masked to -inf -> exp 0).
    logits = jnp.where(is_logit, y, -jnp.inf)
    m = jnp.max(logits, axis=-1, keepdims=True)
    e = jnp.exp(logits - m)
    denom = jnp.sum(e, axis=-1, keepdims=True)
    probs = e / denom                              # exact divide: keeps sum(probs) == 1

    # One lane-dense store: [probs | value | zeros].
    out_ref[...] = jnp.where(is_logit, probs, jnp.where(is_value, y, 0.0))


def policy_forward(x, params, *, tile_b=512):
    """Run the Policy forward pass as a single fused Pallas kernel call.

    Returns (probs, value) matching the PyTorch module's forward().
    """
    w1, b1, w2, b2, w3, b3 = params
    B, in_size = x.shape
    hidden = w1.shape[1]
    out_size = w2.shape[1]

    # Pack the two head weights/biases into one lane-padded slab (width 128k).
    n_head = out_size + 1
    n_pad = ((n_head + 127) // 128) * 128
    w23 = jnp.zeros((hidden, n_pad), jnp.float32)
    w23 = w23.at[:, :out_size].set(w2)
    w23 = w23.at[:, out_size:out_size + 1].set(w3)
    b23 = jnp.zeros((1, n_pad), jnp.float32)
    b23 = b23.at[:, :out_size].set(b2)
    b23 = b23.at[:, out_size:out_size + 1].set(b3)

    # Batch tiling: stream TILE_B-row blocks, weights stay resident in VMEM.
    tb = B if B <= tile_b else tile_b
    grid = (pl.cdiv(B, tb),)

    kernel = functools.partial(policy_kernel, out_size=out_size)
    out = pl.pallas_call(
        kernel,
        out_shape=jax.ShapeDtypeStruct((B, n_pad), jnp.float32),
        grid=grid,
        in_specs=[
            pl.BlockSpec((tb, in_size), lambda i: (i, 0)),       # x: streamed
            pl.BlockSpec((in_size, hidden), lambda i: (0, 0)),   # W1: resident
            pl.BlockSpec((1, hidden), lambda i: (0, 0)),         # b1: resident
            pl.BlockSpec((hidden, n_pad), lambda i: (0, 0)),     # packed heads W
            pl.BlockSpec((1, n_pad), lambda i: (0, 0)),          # packed heads b
        ],
        out_specs=pl.BlockSpec((tb, n_pad), lambda i: (i, 0)),
        compiler_params=pltpu.CompilerParams(
            dimension_semantics=("parallel",)),                  # shard batch on v7x TCs
    )(x, w1, b1, w23, b23)

    probs = out[:, :out_size]
    value = out[:, out_size:out_size + 1]
    return probs, value


def init_linear(key, fan_in, fan_out):
    """Deterministic init matching torch.nn.Linear (uniform +/- 1/sqrt(fan_in))."""
    kw, kb = jax.random.split(key)
    bound = 1.0 / math.sqrt(fan_in)
    w = jax.random.uniform(kw, (fan_in, fan_out), jnp.float32, -bound, bound)
    b = jax.random.uniform(kb, (1, fan_out), jnp.float32, -bound, bound)
    return w, b


if __name__ == "__main__":
    # Small shapes consistent with the module: Policy(in_size, hidden_size, out_size)
    batch, in_size, hidden_size, out_size = 2, 8, 32, 4

    key = jax.random.PRNGKey(0)
    k_x, k1, k2, k3 = jax.random.split(key, 4)

    x = jax.random.normal(k_x, (batch, in_size), jnp.float32)
    w1, b1 = init_linear(k1, in_size, hidden_size)       # fc1
    w2, b2 = init_linear(k2, hidden_size, out_size)      # action_head
    w3, b3 = init_linear(k3, hidden_size, 1)             # critics_value_head
    params = (w1, b1, w2, b2, w3, b3)

    probs, value = policy_forward(x, params)
    jax.block_until_ready((probs, value))

    # Pure-JAX reference check
    h_ref = jnp.maximum(x @ w1 + b1, 0.0)
    probs_ref = jax.nn.softmax(h_ref @ w2 + b2, axis=-1)
    value_ref = h_ref @ w3 + b3
    assert jnp.allclose(probs, probs_ref, atol=1e-5), "probs mismatch"
    assert jnp.allclose(value, value_ref, atol=1e-5), "value mismatch"
    assert jnp.allclose(jnp.sum(probs, axis=-1), 1.0, atol=1e-5), "softmax not normalized"

    print("KERNEL_OK")
</pallas_src>

<mosaic_0001>
module attributes {stable_mosaic.version = 11 : i64} {
  func.func @policy_kernel(%arg0: i32, %arg1: memref<2x8xf32, #tpu.memory_space<vmem>>, %arg2: memref<8x32xf32, #tpu.memory_space<vmem>>, %arg3: memref<1x32xf32, #tpu.memory_space<vmem>>, %arg4: memref<32x128xf32, #tpu.memory_space<vmem>>, %arg5: memref<1x128xf32, #tpu.memory_space<vmem>>, %arg6: memref<2x128xf32, #tpu.memory_space<vmem>>) attributes {dimension_semantics = [#tpu.dimension_semantics<parallel>], iteration_bounds = array<i64: 1>, scalar_prefetch = 0 : i64, scratch_operands = 0 : i64, tpu.core_type = #tpu.core_type<tc>, window_params = [{transform_indices = @transform_0, window_bounds = array<i64: 2, 8>}, {pipeline_mode = #tpu.pipeline_mode<synchronous>, transform_indices = @transform_1, window_bounds = array<i64: 8, 32>}, {pipeline_mode = #tpu.pipeline_mode<synchronous>, transform_indices = @transform_2, window_bounds = array<i64: 1, 32>}, {pipeline_mode = #tpu.pipeline_mode<synchronous>, transform_indices = @transform_3, window_bounds = array<i64: 32, 128>}, {pipeline_mode = #tpu.pipeline_mode<synchronous>, transform_indices = @transform_4, window_bounds = array<i64: 1, 128>}, {transform_indices = @transform_5, window_bounds = array<i64: 2, 128>}]} {
    %c0 = arith.constant 0 : index
    %c0_0 = arith.constant 0 : index
    %0 = vector.load %arg1[%c0, %c0_0] : memref<2x8xf32, #tpu.memory_space<vmem>>, vector<2x8xf32>
    %c0_1 = arith.constant 0 : index
    %c0_2 = arith.constant 0 : index
    %1 = vector.load %arg2[%c0_1, %c0_2] : memref<8x32xf32, #tpu.memory_space<vmem>>, vector<8x32xf32>
    %cst = arith.constant dense<0.000000e+00> : vector<2x32xf32>
    %2 = tpu.matmul %0, %1, %cst {dimension_numbers = #tpu.dot_dimension_numbers<[1], [0], [0], [1], [0, 0, 1, 1], [], []>} : vector<2x8xf32>, vector<8x32xf32>, vector<2x32xf32> -> vector<2x32xf32>
    %c0_3 = arith.constant 0 : index
    %c0_4 = arith.constant 0 : index
    %3 = vector.load %arg3[%c0_3, %c0_4] : memref<1x32xf32, #tpu.memory_space<vmem>>, vector<1x32xf32>
    %4 = vector.broadcast %3 : vector<1x32xf32> to vector<2x32xf32>
    %5 = arith.addf %2, %4 : vector<2x32xf32>
    %cst_5 = arith.constant 0.000000e+00 : f32
    %6 = vector.broadcast %cst_5 : f32 to vector<2x32xf32>
    %7 = arith.maximumf %5, %6 : vector<2x32xf32>
    %c0_6 = arith.constant 0 : index
    %c0_7 = arith.constant 0 : index
    %8 = vector.load %arg4[%c0_6, %c0_7] : memref<32x128xf32, #tpu.memory_space<vmem>>, vector<32x128xf32>
    %cst_8 = arith.constant dense<0.000000e+00> : vector<2x128xf32>
    %9 = tpu.matmul %7, %8, %cst_8 {dimension_numbers = #tpu.dot_dimension_numbers<[1], [0], [0], [1], [0, 0, 1, 1], [], []>} : vector<2x32xf32>, vector<32x128xf32>, vector<2x128xf32> -> vector<2x128xf32>
    %c0_9 = arith.constant 0 : index
    %c0_10 = arith.constant 0 : index
    %10 = vector.load %arg5[%c0_9, %c0_10] : memref<1x128xf32, #tpu.memory_space<vmem>>, vector<1x128xf32>
    %11 = vector.broadcast %10 : vector<1x128xf32> to vector<2x128xf32>
    %12 = arith.addf %9, %11 : vector<2x128xf32>
    %13 = tpu.iota {dimensions = array<i32: 1>} : vector<2x128xi32>
    %c4_i32 = arith.constant 4 : i32
    %14 = vector.broadcast %c4_i32 : i32 to vector<2x128xi32>
    %15 = arith.cmpi slt, %13, %14 : vector<2x128xi32>
    %c4_i32_11 = arith.constant 4 : i32
    %16 = vector.broadcast %c4_i32_11 : i32 to vector<2x128xi32>
    %17 = arith.cmpi eq, %13, %16 : vector<2x128xi32>
    %cst_12 = arith.constant 0xFF800000 : f32
    %18 = vector.broadcast %cst_12 : f32 to vector<2x128xf32>
    %19 = arith.select %15, %12, %18 : vector<2x128xi1>, vector<2x128xf32>
    %cst_13 = arith.constant dense<0xFF800000> : vector<2xf32>
    %20 = vector.multi_reduction <maximumf>, %19, %cst_13 [1] : vector<2x128xf32> to vector<2xf32>
    %21 = vector.shape_cast %20 : vector<2xf32> to vector<2x1xf32>
    %22 = vector.broadcast %21 : vector<2x1xf32> to vector<2x128xf32>
    %23 = arith.subf %19, %22 : vector<2x128xf32>
    %24 = math.exp %23 : vector<2x128xf32>
    %cst_14 = arith.constant dense<0.000000e+00> : vector<2xf32>
    %25 = vector.multi_reduction <add>, %24, %cst_14 [1] : vector<2x128xf32> to vector<2xf32>
    %26 = vector.shape_cast %25 : vector<2xf32> to vector<2x1xf32>
    %27 = vector.broadcast %26 : vector<2x1xf32> to vector<2x128xf32>
    %28 = arith.divf %24, %27 : vector<2x128xf32>
    %cst_15 = arith.constant 0.000000e+00 : f32
    %29 = vector.broadcast %cst_15 : f32 to vector<2x128xf32>
    %30 = arith.select %17, %12, %29 : vector<2x128xi1>, vector<2x128xf32>
    %31 = arith.select %15, %28, %30 : vector<2x128xi1>, vector<2x128xf32>
    %c0_16 = arith.constant 0 : index
    %c0_17 = arith.constant 0 : index
    %32 = vector.load %arg6[%c0_16, %c0_17] : memref<2x128xf32, #tpu.memory_space<vmem>>, vector<2x128xf32>
    tpu.vector_store %arg6[%c0_16, %c0_17], %31 {strides = array<i32>} : memref<2x128xf32, #tpu.memory_space<vmem>>, vector<2x128xf32>,
    return
  }
  func.func @transform_0(%arg0: i32) -> (i32, i32) {
    %c0_i32 = arith.constant 0 : i32
    %c0_i32_0 = arith.constant 0 : i32
    return %arg0, %c0_i32 : i32, i32
  }
  func.func @transform_1(%arg0: i32) -> (i32, i32) {
    %c0_i32 = arith.constant 0 : i32
    %c0_i32_0 = arith.constant 0 : i32
    %c0_i32_1 = arith.constant 0 : i32
    return %c0_i32, %c0_i32_0 : i32, i32
  }
  func.func @transform_2(%arg0: i32) -> (i32, i32) {
    %c0_i32 = arith.constant 0 : i32
    %c0_i32_0 = arith.constant 0 : i32
    %c0_i32_1 = arith.constant 0 : i32
    return %c0_i32, %c0_i32_0 : i32, i32
  }
  func.func @transform_3(%arg0: i32) -> (i32, i32) {
    %c0_i32 = arith.constant 0 : i32
    %c0_i32_0 = arith.constant 0 : i32
    %c0_i32_1 = arith.constant 0 : i32
    return %c0_i32, %c0_i32_0 : i32, i32
  }
  func.func @transform_4(%arg0: i32) -> (i32, i32) {
    %c0_i32 = arith.constant 0 : i32
    %c0_i32_0 = arith.constant 0 : i32
    %c0_i32_1 = arith.constant 0 : i32
    return %c0_i32, %c0_i32_0 : i32, i32
  }
  func.func @transform_5(%arg0: i32) -> (i32, i32) {
    %c0_i32 = arith.constant 0 : i32
    %c0_i32_0 = arith.constant 0 : i32
    return %arg0, %c0_i32 : i32, i32
  }
}

</mosaic_0001>

<llo_original>
// kernel: tpu_custom_call.1
$region0: #{tpu_custom_call.1}
  #allocation0 [shape = 'u32[]', space=smem, size = 0x4, offset = 0x4, fixed_abs, tag = 'smem constant byte address 0x4 - core index']
  #allocation1 [shape = 'u32[72,128]{1,0:T(1,128)}', space=vmem, size = 0x9000, scoped, tag = 'internal scratch']
  %s0 = inlined_call_operand.hbm [shape: f32[2,8], index: 0, kind: input, shape index: {}]
  %s1 = inlined_call_operand.hbm [shape: f32[8,32], index: 1, kind: input, shape index: {}]
  %s2 = inlined_call_operand.vmem [shape: f32[1,32], index: 2, kind: input, shape index: {}]
  %s3 = inlined_call_operand.hbm [shape: f32[32,128], index: 3, kind: input, shape index: {}]
  %s4 = inlined_call_operand.vmem [shape: f32[1,128], index: 4, kind: input, shape index: {}]
  %s5 = inlined_call_operand.hbm [shape: f32[2,128], index: 5, kind: output, shape index: {}]
  %s6 = sld [smem:[#allocation0]]
  $region42: #{tpu_custom_call.1} parent=0
    _
  %s8 = ssub.s32 1, %s6
  %s9 = scalar_select 0, %s8, %s6
  $region1: #{tpu_custom_call.1} parent=0
    #allocation2 [shape = 'u8[1024]{0}', space=vmem, size = 0x400, scoped, tag = 'input window, operand 0, single buffered']
    #allocation3 [shape = 's32[1]{0}', space=sflag, size = 0x4, scoped, tag = 'scoped memory for tpu_custom_call.1']
    #allocation4 [shape = 's32[1]{0}', space=sflag, size = 0x4, scoped, tag = 'scoped memory for tpu_custom_call.1']
    #allocation5 [shape = 'u8[4096]{0}', space=vmem, size = 0x1000, scoped, tag = 'input window, operand 1, single buffered']
    #allocation6 [shape = 's32[1]{0}', space=sflag, size = 0x4, scoped, tag = 'scoped memory for tpu_custom_call.1']
    #allocation7 [shape = 'u8[16384]{0}', space=vmem, size = 0x4000, scoped, tag = 'input window, operand 3, single buffered']
    #allocation8 [shape = 'u8[1024]{0}', space=vmem, size = 0x400, scoped, tag = 'output window, operand 0, single buffered']
    %10 = vsyncpa [#allocation3], 0
    %11 = vsyncpa [#allocation6], 0
    %12 = vsyncpa [#allocation4], 0
    // Predicated region
    $region2: #{tpu_custom_call.1} parent=1 // pred_check
      _
    $region3: #{tpu_custom_call.1} parent=1 // pred_check_branch
      %14 = sbr.rel (0) target = $region5
    $region4: #{tpu_custom_call.1} parent=1 // pred_region
      %16 = vsyncadd [#allocation3], 0
      %s18 = sshll.u32 %s0, 4
      %s19 = int_to_ptr.hbm [resolvable:$true] %s18
      %s20 = sshll.u32 [#allocation2], 4
      %s21 = int_to_ptr.vmem [resolvable:$true] %s20
      %23 = dma.hbm_to_vmem [thread:$0]  %s19, 32, %s21, [#allocation3]
    $region5: #{tpu_custom_call.1} parent=1 // pred_fallthru
      _
    // Predicated region
    $region6: #{tpu_custom_call.1} parent=1 // pred_check
      _
    $region7: #{tpu_custom_call.1} parent=1 // pred_check_branch
      %25 = sbr.rel (0) target = $region9
    $region8: #{tpu_custom_call.1} parent=1 // pred_region
      %27 = vsyncadd [#allocation6], 0
      %s29 = sshll.u32 %s1, 4
      %s30 = int_to_ptr.hbm [resolvable:$true] %s29
      %s31 = sshll.u32 [#allocation5], 4
      %s32 = int_to_ptr.vmem [resolvable:$true] %s31
      %34 = dma.hbm_to_vmem [thread:$0]  %s30, 128, %s32, [#allocation6]
    $region9: #{tpu_custom_call.1} parent=1 // pred_fallthru
      _
    // Predicated region
    $region10: #{tpu_custom_call.1} parent=1 // pred_check
      _
    $region11: #{tpu_custom_call.1} parent=1 // pred_check_branch
      %36 = sbr.rel (0) target = $region13
    $region12: #{tpu_custom_call.1} parent=1 // pred_region
      _
    $region13: #{tpu_custom_call.1} parent=1 // pred_fallthru
      _
    // Predicated region
    $region14: #{tpu_custom_call.1} parent=1 // pred_check
      _
    $region15: #{tpu_custom_call.1} parent=1 // pred_check_branch
      %38 = sbr.rel (0) target = $region17
    $region16: #{tpu_custom_call.1} parent=1 // pred_region
      %40 = vsyncadd [#allocation6], 0
      %s41 = sshll.u32 %s3, 4
      %s42 = int_to_ptr.hbm [resolvable:$true] %s41
      %s43 = sshll.u32 [#allocation7], 4
      %s44 = int_to_ptr.vmem [resolvable:$true] %s43
      %49 = dma.hbm_to_vmem [thread:$0]  %s42, 512, %s44, [#allocation6], 128, 128, 8
    $region17: #{tpu_custom_call.1} parent=1 // pred_fallthru
      _
    // Predicated region
    $region18: #{tpu_custom_call.1} parent=1 // pred_check
      _
    $region19: #{tpu_custom_call.1} parent=1 // pred_check_branch
      %51 = sbr.rel (0) target = $region21
    $region20: #{tpu_custom_call.1} parent=1 // pred_region
      _
    $region21: #{tpu_custom_call.1} parent=1 // pred_fallthru
      _
    // Predicated region
    $region22: #{tpu_custom_call.1} parent=1 // pred_check
      _
    $region23: #{tpu_custom_call.1} parent=1 // pred_check_branch
      %53 = sbr.rel (0) target = $region25
    $region24: #{tpu_custom_call.1} parent=1 // pred_region
      %55 = dma.done [#allocation3], 32
    $region25: #{tpu_custom_call.1} parent=1 // pred_fallthru
      _
    // Predicated region
    $region26: #{tpu_custom_call.1} parent=1 // pred_check
      _
    $region27: #{tpu_custom_call.1} parent=1 // pred_check_branch
      %57 = sbr.rel (0) target = $region29
    $region28: #{tpu_custom_call.1} parent=1 // pred_region
      %59 = dma.done [#allocation6], 128
    $region29: #{tpu_custom_call.1} parent=1 // pred_fallthru
      _
    // Predicated region
    $region30: #{tpu_custom_call.1} parent=1 // pred_check
      _
    $region31: #{tpu_custom_call.1} parent=1 // pred_check_branch
      %61 = sbr.rel (0) target = $region33
    $region32: #{tpu_custom_call.1} parent=1 // pred_region
      %63 = dma.done [#allocation6], 512
    $region33: #{tpu_custom_call.1} parent=1 // pred_fallthru
      _
    %v64 = vld [vmem:[#allocation2] sm:$0x3]
    %v65 = vld [vmem:[#allocation5] sm:$0xff]
    %v66 = vld [vmem:[%s2] sm:$0x1]
    %v68 = vperm.slane %v66, 0
    %vm70 = vcmask 64512
    %v72 = vsel %vm70, %v64, 0
    %74 = vmatpush.msra.mxu0 0.0
    %75 = vmatpush.msra.mxu0 0.0
    %76 = vmatpush.msra.mxu0 0.0
    %77 = vmatpush.msra.mxu0 0.0
    %78 = vmatpush.msra.mxu0 0.0
    %79 = vmatpush.msra.mxu0 0.0
    %80 = vmatpush.msra.mxu0 0.0
    %81 = vmatpush.msra.mxu0 0.0
    %82 = vmatpush.msra.mxu0 0.0
    %83 = vmatpush.msra.mxu0 0.0
    %84 = vmatpush.msra.mxu0 0.0
    %85 = vmatpush.msra.mxu0 0.0
    %86 = vmatpush.msra.mxu0 0.0
    %87 = vmatpush.msra.mxu0 0.0
    %88 = vmatpush.msra.mxu0 0.0
    %89 = vmatpush.msra.mxu0 %v65
    %90 = vmatmul.f32.gmra.mxu0 %v72
    %v91 = vpop.f32.mrf.mxu0
    %v92 = vadd.f32 %v68, %v91
    %93 = vdwg.mxu0
    %v94 = vmax.f32 %v92, 0.0
    %v95 = vld [vmem:[#allocation7] sm:$0xff]
    %v96 = vld [vmem:[#allocation7 + $0x8] sm:$0xff]
    %v97 = vld [vmem:[#allocation7 + $0x10] sm:$0xff]
    %v98 = vld [vmem:[#allocation7 + $0x18] sm:$0xff]
    %v99 = vld [vmem:[%s4] sm:$0x1]
    %v101 = vperm.slane %v99, 0
    %vm103 = vcmask 261120
    %v105 = vsel %vm103, %v94, 0
    %107 = vmatpush.msra.mxu0 0.0
    %108 = vmatpush.msra.mxu0 0.0
    %109 = vmatpush.msra.mxu0 0.0
    %110 = vmatpush.msra.mxu0 0.0
    %111 = vmatpush.msra.mxu0 0.0
    %112 = vmatpush.msra.mxu0 0.0
    %113 = vmatpush.msra.mxu0 0.0
    %114 = vmatpush.msra.mxu0 0.0
    %115 = vmatpush.msra.mxu0 0.0
    %116 = vmatpush.msra.mxu0 0.0
    %117 = vmatpush.msra.mxu0 0.0
    %118 = vmatpush.msra.mxu0 0.0
    %119 = vmatpush.msra.mxu0 %v98
    %120 = vmatpush.msra.mxu0 %v97
    %121 = vmatpush.msra.mxu0 %v96
    %122 = vmatpush.msra.mxu0 %v95
    %123 = vmatmul.f32.gmra.mxu0 %v105
    %v124 = vpop.f32.mrf.mxu0
    %v125 = vadd.f32 %v101, %v124
    %126 = vdwg.mxu0
    %v127 = vlaneseq
    %v128 = vand.u32 %v127, 127
    %vm129 = vcmp.lt.s32.totalorder %v128, 4
    %vm130 = vcmp.eq.s32.totalorder %v128, 4
    %v131 = vsel %vm129, %v125, -inf
    %vm132 = vcmask 1041408
    %v133 = vsel %vm132, %v131, -inf
    %134 = vmax.xlane.f32.xlu0 %v133
    %v135 = vpop.xlane.xlu0 %134
    %v136 = vsub.f32 %v131, %v135
    %v137 = vmul.f32 %v136, 1.442695
    %v138 = vpow.pop %v137
    %v139 = vsel %vm132, %v138, 0.0
    %140 = vadd.xlane.f32.xlu0 %v139
    %v141 = vpop.xlane.xlu0 %140
    %v142 = vrcp.pop %v141
    %v143 = vmul.f32 %v141, %v142
    %v144 = vsub.f32 1.0, %v143
    %v145 = vmul.f32 %v142, %v144
    %v146 = vadd.f32 %v142, %v145
    %vm147 = vweird.f32 %v141
    %vm148 = vweird.f32 %v142
    %vm149 = vmor %vm147, %vm148
    %v150 = vsel %vm149, %v142, %v146
    %v151 = vand.u32 2147483647, %v141
    %vm152 = vcmp.eq.f32.partialorder %v151, 8.507059e+37
    %v153 = vand.u32 %v141, 2147483648
    %v154 = vor.u32 1.1754944e-38, %v153
    %v155 = vsel %vm152, %v154, %v150
    %v156 = vmul.f32 %v138, %v155
    %v157 = vsel %vm130, %v125, 0.0
    %v158 = vsel %vm129, %v156, %v157
    %159 = vst [vmem:[#allocation8] sm:$0x3] %v158
    // Predicated region
    $region34: #{tpu_custom_call.1} parent=1 // pred_check
      _
    $region35: #{tpu_custom_call.1} parent=1 // pred_check_branch
      %161 = sbr.rel (0) target = $region37
    $region36: #{tpu_custom_call.1} parent=1 // pred_region
      %163 = vsyncadd [#allocation4], 0
      %s165 = sshll.u32 [#allocation8], 4
      %s166 = int_to_ptr.vmem [resolvable:$true] %s165
      %s167 = sshll.u32 %s5, 4
      %s168 = int_to_ptr.hbm [resolvable:$true] %s167
      %170 = dma.vmem_to_hbm [thread:$0]  %s166, 32, %s168, [#allocation4]
    $region37: #{tpu_custom_call.1} parent=1 // pred_fallthru
      _
    // Predicated region
    $region38: #{tpu_custom_call.1} parent=1 // pred_check
      _
    $region39: #{tpu_custom_call.1} parent=1 // pred_check_branch
      %172 = sbr.rel (0) target = $region41
    $region40: #{tpu_custom_call.1} parent=1 // pred_region
      %174 = dma.done [#allocation4], 32
    $region41: #{tpu_custom_call.1} parent=1 // pred_fallthru
      _
    %175 = vsyncpa [#allocation3], 1
    %176 = vsyncpa [#allocation6], 1
    %177 = vsyncpa [#allocation4], 1

</llo_original>
